<compile_context>
chip_gen: v7x
topology: tpu7x:2x2x1
jax: 0.10.0
libtpu: 0.0.40
codegen_flags: <defaults>
</compile_context>

<pallas_src>
from collections import namedtuple

import jax
import jax.numpy as jnp
from jax import lax
from jax.experimental import pallas as pl
from jax.experimental.pallas import tpu as pltpu

NEG = -1e30          # finite "-inf" so log-space arithmetic never produces NaN
BATCH_TILE = 8       # batch rows packed on the sublane axis per CTC grid step


def _lse2(a, b):
    m = jnp.maximum(a, b)
    return m + jnp.log(jnp.exp(a - m) + jnp.exp(b - m))


def _lse3(a, b, c):
    m = jnp.maximum(jnp.maximum(a, b), c)
    return m + jnp.log(jnp.exp(a - m) + jnp.exp(b - m) + jnp.exp(c - m))


# ---------------------------------------------------------------------------
# Kernel 1: attention CTC loss (8 batch rows per grid step, sublane-packed)
# ---------------------------------------------------------------------------
def _ctc_kernel(qmax_ref, key_ref, query_ref, lp_ref, out_ref, logsm_ref):
    # lp_ref    : (T, 8, Kp) raw scores, blank already at lane 0 (wrapper pad)
    # key_ref   : (8, 128) int32 key (text) length per packed batch row
    # query_ref : (8, 128) int32 query (mel) length per packed batch row
    # out_ref   : (8, 128) f32 per-row CTC loss broadcast across lanes
    # logsm_ref : (T, 8, Kp) f32 scratch with the masked log_softmax
    b = pl.program_id(0)
    T, BT, Kp = lp_ref.shape

    kl = key_ref[:, :1]        # (8, 1) int32
    ql = query_ref[:, :1]      # (8, 1) int32

    # ---- masked log_softmax over lanes 0..key_len (blank + key_len labels) --
    x = lp_ref[...]                                            # (T, 8, Kp)
    lane3 = lax.broadcasted_iota(jnp.int32, (T, BT, Kp), 2)
    valid = lane3 <= kl                                        # (8,1) -> (T,8,Kp)
    x = jnp.where(valid, x, NEG)
    m = jnp.max(x, axis=-1, keepdims=True)
    lse = m + jnp.log(jnp.sum(jnp.exp(x - m), axis=-1, keepdims=True))
    logsm_ref[...] = jnp.where(valid, x - lse, NEG)

    # ---- CTC forward (alpha) recursion, all 8 rows at once ------------------
    lane2 = lax.broadcasted_iota(jnp.int32, (BT, Kp), 1)

    row0 = logsm_ref[0]                                        # (8, Kp)
    # alpha_b[k]: log prob of extended position 2k   (blank after label k)
    # alpha_l[k]: log prob of extended position 2k-1 (label k), k >= 1
    alpha_b = jnp.where(lane2 == 0, row0, NEG)
    alpha_l = jnp.where(lane2 == 1, row0, NEG)

    def shift_right(v):        # v[k-1] at lane k, NEG at lane 0
        r = pltpu.roll(v, shift=1, axis=1)
        return jnp.where(lane2 == 0, NEG, r)

    def body(t, carry):
        a_b, a_l = carry
        row = logsm_ref[t]                                     # (8, Kp)
        blank_t = row[:, 0:1]                                  # (8, 1) hoisted blank
        new_b = blank_t + _lse2(a_b, a_l)
        # labels are all distinct -> the "skip" transition is always allowed
        new_l = row + _lse3(a_l, shift_right(a_b), shift_right(a_l))
        live = t < ql                                          # (8, 1) per-row freeze
        a_b = jnp.where(live, new_b, a_b)
        a_l = jnp.where(live, new_l, a_l)
        return a_b, a_l

    # trip count bounded by this tile's max query length (scalar prefetch)
    alpha_b, alpha_l = lax.fori_loop(1, qmax_ref[b], body, (alpha_b, alpha_l))

    sel = lane2 == kl
    final_b = jnp.max(jnp.where(sel, alpha_b, NEG), axis=-1, keepdims=True)
    final_l = jnp.max(jnp.where(sel, alpha_l, NEG), axis=-1, keepdims=True)
    nll = -_lse2(final_b, final_l)                             # -log P(target)
    loss = nll / jnp.maximum(kl, 1).astype(jnp.float32)        # reduction='mean'
    loss = jnp.where(nll > 1e10, 0.0, loss)                    # zero_infinity=True
    out_ref[...] = jnp.broadcast_to(loss, (BT, 128))


def ctc_loss_pallas(attn_logprob, in_lens, out_lens, blank_logprob=-1.0):
    B, _, T, K = attn_logprob.shape
    BT = BATCH_TILE
    Bpad = ((B + BT - 1) // BT) * BT
    Kp = ((K + 1 + 127) // 128) * 128
    nblk = Bpad // BT

    # blank insertion + lane/batch padding + (B,T,K)->(T,Bpad,Kp) layout change
    # (XLA fuses the pads and transpose into a single copy).
    lp = attn_logprob[:, 0, :, :].astype(jnp.float32)
    lp = jnp.pad(lp, ((0, 0), (0, 0), (1, 0)), constant_values=blank_logprob)
    lp = jnp.pad(lp, ((0, Bpad - B), (0, 0), (0, Kp - (K + 1))), constant_values=NEG)
    lp = jnp.transpose(lp, (1, 0, 2))                          # (T, Bpad, Kp)

    kl = jnp.pad(in_lens.astype(jnp.int32), (0, Bpad - B), constant_values=1)
    ql = jnp.pad(out_lens.astype(jnp.int32), (0, Bpad - B), constant_values=1)
    kl2d = jnp.broadcast_to(kl[:, None], (Bpad, 128))
    ql2d = jnp.broadcast_to(ql[:, None], (Bpad, 128))
    qmax = jnp.clip(jnp.max(ql.reshape(nblk, BT), axis=1), 1, T).astype(jnp.int32)

    out = pl.pallas_call(
        _ctc_kernel,
        out_shape=jax.ShapeDtypeStruct((Bpad, 128), jnp.float32),
        grid_spec=pltpu.PrefetchScalarGridSpec(
            num_scalar_prefetch=1,
            grid=(nblk,),
            in_specs=[
                pl.BlockSpec((BT, 128), lambda b, q: (b, 0)),        # key lens
                pl.BlockSpec((BT, 128), lambda b, q: (b, 0)),        # query lens
                pl.BlockSpec((T, BT, Kp), lambda b, q: (0, b, 0)),   # log-probs
            ],
            out_specs=pl.BlockSpec((BT, 128), lambda b, q: (b, 0)),
            scratch_shapes=[pltpu.VMEM((T, BT, Kp), jnp.float32)],
        ),
        # batch tiles are independent and write disjoint output blocks ->
        # safe to shard across the 2 v7x TensorCores.
        compiler_params=pltpu.CompilerParams(dimension_semantics=("parallel",)),
    )(qmax, kl2d, ql2d, lp)
    return jnp.mean(out[:B, 0])                                # cost_total / B


# ---------------------------------------------------------------------------
# Shared helpers for the lane-dense streaming reductions
# ---------------------------------------------------------------------------
def _reduction_layout(n, max_rows=512):
    m = -(-n // 128)
    tr = max_rows if m >= max_rows else ((m + 7) // 8) * 8
    rows_pad = -(-m // tr) * tr
    return tr, rows_pad


def _tiled_rows(flat, pad_value, rows_pad):
    total = rows_pad * 128
    flat = flat.astype(jnp.float32)
    return jnp.pad(flat, (0, total - flat.shape[0]),
                   constant_values=pad_value).reshape(rows_pad, 128)


# ---------------------------------------------------------------------------
# Kernel 2: binarization (masked BCE vs ones) streaming reduction
# ---------------------------------------------------------------------------
def _bin_kernel(hard_ref, soft_ref, out_ref, num_ref, cnt_ref):
    i = pl.program_id(0)

    @pl.when(i == 0)
    def _():
        num_ref[...] = jnp.zeros_like(num_ref)
        cnt_ref[...] = jnp.zeros_like(cnt_ref)

    hard = hard_ref[...]
    soft = soft_ref[...]
    sel = hard == 1.0
    nll = jnp.minimum(-jnp.log(soft), 100.0)   # torch BCE clamps log at -100
    tr = hard.shape[0]
    num_ref[...] += jnp.sum(jnp.where(sel, nll, 0.0).reshape(tr // 8, 8, 128), axis=0)
    cnt_ref[...] += jnp.sum(jnp.where(sel, 1.0, 0.0).reshape(tr // 8, 8, 128), axis=0)

    @pl.when(i == pl.num_programs(0) - 1)
    def _():
        num = jnp.sum(jnp.sum(num_ref[...], axis=0, keepdims=True), axis=1, keepdims=True)
        cnt = jnp.sum(jnp.sum(cnt_ref[...], axis=0, keepdims=True), axis=1, keepdims=True)
        out_ref[...] = num / cnt


def bin_loss_pallas(attn_hard, attn_soft):
    hard = attn_hard.reshape(-1)
    soft = attn_soft.reshape(-1)
    tr, rows_pad = _reduction_layout(hard.shape[0])
    hard2 = _tiled_rows(hard, 0.0, rows_pad)   # padded entries are never selected
    soft2 = _tiled_rows(soft, 1.0, rows_pad)
    out = pl.pallas_call(
        _bin_kernel,
        out_shape=jax.ShapeDtypeStruct((1, 1), jnp.float32),
        grid=(rows_pad // tr,),
        in_specs=[pl.BlockSpec((tr, 128), lambda i: (i, 0)),
                  pl.BlockSpec((tr, 128), lambda i: (i, 0))],
        out_specs=pl.BlockSpec((1, 1), lambda i: (0, 0)),
        scratch_shapes=[pltpu.VMEM((8, 128), jnp.float32),
                        pltpu.VMEM((8, 128), jnp.float32)],
        compiler_params=pltpu.CompilerParams(dimension_semantics=("arbitrary",)),
    )(hard2, soft2)
    return out[0, 0]


# ---------------------------------------------------------------------------
# Kernel 3: masked noise MSE (diffusion head) streaming reduction
# ---------------------------------------------------------------------------
def _mse_kernel(x_ref, y_ref, w_ref, out_ref, num_ref, den_ref):
    i = pl.program_id(0)

    @pl.when(i == 0)
    def _():
        num_ref[...] = jnp.zeros_like(num_ref)
        den_ref[...] = jnp.zeros_like(den_ref)

    d = x_ref[...] - y_ref[...]
    w = w_ref[...]
    tr = w.shape[0]
    num_ref[...] += jnp.sum((d * d * w).reshape(tr // 8, 8, 128), axis=0)
    den_ref[...] += jnp.sum(w.reshape(tr // 8, 8, 128), axis=0)

    @pl.when(i == pl.num_programs(0) - 1)
    def _():
        num = jnp.sum(jnp.sum(num_ref[...], axis=0, keepdims=True), axis=1, keepdims=True)
        den = jnp.sum(jnp.sum(den_ref[...], axis=0, keepdims=True), axis=1, keepdims=True)
        out_ref[...] = num / den


def masked_noise_mse_pallas(noise, noise_hat, frame_mask):
    # torch: ((noise - noise_hat)**2 * mask).sum() / (n_dims * mask.sum())
    # Broadcasting the (B, T) frame mask over the n_dims channels makes the
    # denominator exactly sum(broadcast mask), i.e. this is a masked mean.
    B, C, T = noise.shape
    w = jnp.broadcast_to(frame_mask.astype(jnp.float32)[:, None, :], (B, C, T))
    x = noise.reshape(-1)
    y = noise_hat.reshape(-1)
    w = w.reshape(-1)
    tr, rows_pad = _reduction_layout(x.shape[0])
    x2 = _tiled_rows(x, 0.0, rows_pad)
    y2 = _tiled_rows(y, 0.0, rows_pad)
    w2 = _tiled_rows(w, 0.0, rows_pad)
    out = pl.pallas_call(
        _mse_kernel,
        out_shape=jax.ShapeDtypeStruct((1, 1), jnp.float32),
        grid=(rows_pad // tr,),
        in_specs=[pl.BlockSpec((tr, 128), lambda i: (i, 0)),
                  pl.BlockSpec((tr, 128), lambda i: (i, 0)),
                  pl.BlockSpec((tr, 128), lambda i: (i, 0))],
        out_specs=pl.BlockSpec((1, 1), lambda i: (0, 0)),
        scratch_shapes=[pltpu.VMEM((8, 128), jnp.float32),
                        pltpu.VMEM((8, 128), jnp.float32)],
        compiler_params=pltpu.CompilerParams(dimension_semantics=("arbitrary",)),
    )(x2, y2, w2)
    return out[0, 0]


# ---------------------------------------------------------------------------
# Module wrappers (match the torch forward passes)
# ---------------------------------------------------------------------------
class AttentionLossPallas:
    def __init__(self, CTC_blank_logprob=-1, kl_loss_start_iter=5000,
                 binarization_loss_weight=1.0, ctc_loss_weight=0.1):
        self.blank_logprob = float(CTC_blank_logprob)
        self.kl_loss_start_iter = kl_loss_start_iter
        self.binarization_loss_weight = binarization_loss_weight
        self.ctc_loss_weight = ctc_loss_weight

    def __call__(self, attn, attn_soft, attn_logprob, global_step, in_lens, out_lens):
        loss_dict = {}
        ctc_cost = ctc_loss_pallas(attn_logprob, in_lens, out_lens, self.blank_logprob)
        loss_dict['loss_ctc'] = (ctc_cost, self.ctc_loss_weight)
        if global_step > self.kl_loss_start_iter:
            binarization_loss = bin_loss_pallas(attn, attn_soft)
        else:
            binarization_loss = 0.0
        loss_dict['binarization_loss'] = (binarization_loss, self.binarization_loss_weight)
        return loss_dict


class RADTTSDiffusionLossPallas:
    def __init__(self, CTC_blank_logprob=-1, kl_loss_start_iter=5000,
                 binarization_loss_weight=1.0, ctc_loss_weight=0.1):
        self.attn_loss = AttentionLossPallas(CTC_blank_logprob, kl_loss_start_iter,
                                             binarization_loss_weight, ctc_loss_weight)

    def __call__(self, model_output, in_lens, out_lens, global_step):
        loss_dict = {}
        if len(model_output['noise_hat']):
            loss_noise = masked_noise_mse_pallas(model_output['noise'],
                                                 model_output['noise_hat'],
                                                 out_lens.mask)
            loss_dict['noise_mse_loss'] = (loss_noise, 1.0)
        attn_loss_dict = self.attn_loss(model_output['attn'], model_output['attn_soft'],
                                        model_output['attn_logprob'], global_step,
                                        in_lens.lengths, out_lens.lengths)
        for k, v in attn_loss_dict.items():
            loss_dict[k] = v
        return loss_dict


LengthInfo = namedtuple("LengthInfo", ["lengths", "mask"])


if __name__ == "__main__":
    key = jax.random.PRNGKey(0)
    B, T, K, C = 2, 16, 8, 4        # batch, mel frames, text tokens, noise dims
    k1, k2, k3, k4 = jax.random.split(key, 4)

    attn_logprob = jax.random.normal(k1, (B, 1, T, K), dtype=jnp.float32)
    attn_soft = jax.nn.softmax(jax.random.normal(k2, (B, 1, T, K), dtype=jnp.float32), axis=-1)
    attn_hard = jax.nn.one_hot(jnp.argmax(attn_soft, axis=-1), K, dtype=jnp.float32)

    in_lens = jnp.array([8, 6], dtype=jnp.int32)       # text (key) lengths
    out_lens = jnp.array([16, 12], dtype=jnp.int32)    # mel (query) lengths

    noise = jax.random.normal(k3, (B, C, T), dtype=jnp.float32)
    noise_hat = jax.random.normal(k4, (B, C, T), dtype=jnp.float32)

    in_lens_obj = LengthInfo(
        lengths=in_lens,
        mask=(jnp.arange(K)[None, :] < in_lens[:, None]).astype(jnp.float32))
    out_lens_obj = LengthInfo(
        lengths=out_lens,
        mask=(jnp.arange(T)[None, :] < out_lens[:, None]).astype(jnp.float32))

    model_output = {
        'noise': noise, 'noise_hat': noise_hat,
        'attn': attn_hard, 'attn_soft': attn_soft, 'attn_logprob': attn_logprob,
    }

    loss_mod = RADTTSDiffusionLossPallas()
    loss_dict = loss_mod(model_output, in_lens_obj, out_lens_obj, global_step=6000)

    mse = jax.block_until_ready(loss_dict['noise_mse_loss'][0])
    ctc = jax.block_until_ready(loss_dict['loss_ctc'][0])
    binl = jax.block_until_ready(loss_dict['binarization_loss'][0])
    assert bool(jnp.isfinite(mse)) and bool(jnp.isfinite(ctc)) and bool(jnp.isfinite(binl))
    print("KERNEL_OK")
</pallas_src>

<mosaic_0001>
module attributes {stable_mosaic.version = 11 : i64} {
  func.func @_mse_kernel(%arg0: i32, %arg1: memref<8x128xf32, #tpu.memory_space<vmem>>, %arg2: memref<8x128xf32, #tpu.memory_space<vmem>>, %arg3: memref<8x128xf32, #tpu.memory_space<vmem>>, %arg4: memref<1x1xf32, #tpu.memory_space<vmem>>, %arg5: memref<8x128xf32, #tpu.memory_space<vmem>>, %arg6: memref<8x128xf32, #tpu.memory_space<vmem>>) attributes {dimension_semantics = [#tpu.dimension_semantics<arbitrary>], iteration_bounds = array<i64: 1>, scalar_prefetch = 0 : i64, scratch_operands = 2 : i64, tpu.core_type = #tpu.core_type<tc>, window_params = [{transform_indices = @transform_0, window_bounds = array<i64: 8, 128>}, {transform_indices = @transform_1, window_bounds = array<i64: 8, 128>}, {transform_indices = @transform_2, window_bounds = array<i64: 8, 128>}, {pipeline_mode = #tpu.pipeline_mode<synchronous>, transform_indices = @transform_3, window_bounds = array<i64: 1, 1>}]} {
    %c0_i32 = arith.constant 0 : i32
    %0 = arith.cmpi eq, %arg0, %c0_i32 : i32
    %1 = arith.extui %0 : i1 to i32
    %c0_i32_0 = arith.constant 0 : i32
    %2 = arith.cmpi ne, %1, %c0_i32_0 : i32
    scf.if %2 {
      %cst_17 = arith.constant 0.000000e+00 : f32
      %22 = vector.broadcast %cst_17 : f32 to vector<8x128xf32>
      %c0_18 = arith.constant 0 : index
      %c0_19 = arith.constant 0 : index
      %23 = vector.load %arg5[%c0_18, %c0_19] : memref<8x128xf32, #tpu.memory_space<vmem>>, vector<8x128xf32>
      tpu.vector_store %arg5[%c0_18, %c0_19], %22 {strides = array<i32>} : memref<8x128xf32, #tpu.memory_space<vmem>>, vector<8x128xf32>,
      %cst_20 = arith.constant 0.000000e+00 : f32
      %24 = vector.broadcast %cst_20 : f32 to vector<8x128xf32>
      %c0_21 = arith.constant 0 : index
      %c0_22 = arith.constant 0 : index
      %25 = vector.load %arg6[%c0_21, %c0_22] : memref<8x128xf32, #tpu.memory_space<vmem>>, vector<8x128xf32>
      tpu.vector_store %arg6[%c0_21, %c0_22], %24 {strides = array<i32>} : memref<8x128xf32, #tpu.memory_space<vmem>>, vector<8x128xf32>,
    } else {
    }
    %c0 = arith.constant 0 : index
    %c0_1 = arith.constant 0 : index
    %3 = vector.load %arg1[%c0, %c0_1] : memref<8x128xf32, #tpu.memory_space<vmem>>, vector<8x128xf32>
    %c0_2 = arith.constant 0 : index
    %c0_3 = arith.constant 0 : index
    %4 = vector.load %arg2[%c0_2, %c0_3] : memref<8x128xf32, #tpu.memory_space<vmem>>, vector<8x128xf32>
    %5 = arith.subf %3, %4 : vector<8x128xf32>
    %c0_4 = arith.constant 0 : index
    %c0_5 = arith.constant 0 : index
    %6 = vector.load %arg3[%c0_4, %c0_5] : memref<8x128xf32, #tpu.memory_space<vmem>>, vector<8x128xf32>
    %c0_6 = arith.constant 0 : index
    %c0_7 = arith.constant 0 : index
    %7 = vector.load %arg5[%c0_6, %c0_7] : memref<8x128xf32, #tpu.memory_space<vmem>>, vector<8x128xf32>
    %8 = arith.mulf %5, %5 : vector<8x128xf32>
    %9 = arith.mulf %8, %6 : vector<8x128xf32>
    %10 = vector.shape_cast %9 : vector<8x128xf32> to vector<1x8x128xf32>
    %cst = arith.constant dense<0.000000e+00> : vector<8x128xf32>
    %11 = vector.multi_reduction <add>, %10, %cst [0] : vector<1x8x128xf32> to vector<8x128xf32>
    %12 = arith.addf %7, %11 : vector<8x128xf32>
    %c0_8 = arith.constant 0 : index
    %c0_9 = arith.constant 0 : index
    %13 = vector.load %arg5[%c0_8, %c0_9] : memref<8x128xf32, #tpu.memory_space<vmem>>, vector<8x128xf32>
    tpu.vector_store %arg5[%c0_8, %c0_9], %12 {strides = array<i32>} : memref<8x128xf32, #tpu.memory_space<vmem>>, vector<8x128xf32>,
    %c0_10 = arith.constant 0 : index
    %c0_11 = arith.constant 0 : index
    %14 = vector.load %arg6[%c0_10, %c0_11] : memref<8x128xf32, #tpu.memory_space<vmem>>, vector<8x128xf32>
    %15 = vector.shape_cast %6 : vector<8x128xf32> to vector<1x8x128xf32>
    %cst_12 = arith.constant dense<0.000000e+00> : vector<8x128xf32>
    %16 = vector.multi_reduction <add>, %15, %cst_12 [0] : vector<1x8x128xf32> to vector<8x128xf32>
    %17 = arith.addf %14, %16 : vector<8x128xf32>
    %c0_13 = arith.constant 0 : index
    %c0_14 = arith.constant 0 : index
    %18 = vector.load %arg6[%c0_13, %c0_14] : memref<8x128xf32, #tpu.memory_space<vmem>>, vector<8x128xf32>
    tpu.vector_store %arg6[%c0_13, %c0_14], %17 {strides = array<i32>} : memref<8x128xf32, #tpu.memory_space<vmem>>, vector<8x128xf32>,
    %c0_i32_15 = arith.constant 0 : i32
    %19 = arith.cmpi eq, %arg0, %c0_i32_15 : i32
    %20 = arith.extui %19 : i1 to i32
    %c0_i32_16 = arith.constant 0 : i32
    %21 = arith.cmpi ne, %20, %c0_i32_16 : i32
    scf.if %21 {
      %c0_17 = arith.constant 0 : index
      %c0_18 = arith.constant 0 : index
      %22 = vector.load %arg5[%c0_17, %c0_18] : memref<8x128xf32, #tpu.memory_space<vmem>>, vector<8x128xf32>
      %cst_19 = arith.constant dense<0.000000e+00> : vector<128xf32>
      %23 = vector.multi_reduction <add>, %22, %cst_19 [0] : vector<8x128xf32> to vector<128xf32>
      %24 = vector.shape_cast %23 : vector<128xf32> to vector<1x128xf32>
      %cst_20 = arith.constant dense<0.000000e+00> : vector<1xf32>
      %25 = vector.multi_reduction <add>, %24, %cst_20 [1] : vector<1x128xf32> to vector<1xf32>
      %26 = vector.shape_cast %25 : vector<1xf32> to vector<1x1xf32>
      %c0_21 = arith.constant 0 : index
      %c0_22 = arith.constant 0 : index
      %27 = vector.load %arg6[%c0_21, %c0_22] : memref<8x128xf32, #tpu.memory_space<vmem>>, vector<8x128xf32>
      %cst_23 = arith.constant dense<0.000000e+00> : vector<128xf32>
      %28 = vector.multi_reduction <add>, %27, %cst_23 [0] : vector<8x128xf32> to vector<128xf32>
      %29 = vector.shape_cast %28 : vector<128xf32> to vector<1x128xf32>
      %cst_24 = arith.constant dense<0.000000e+00> : vector<1xf32>
      %30 = vector.multi_reduction <add>, %29, %cst_24 [1] : vector<1x128xf32> to vector<1xf32>
      %31 = vector.shape_cast %30 : vector<1xf32> to vector<1x1xf32>
      %32 = arith.divf %26, %31 : vector<1x1xf32>
      %c0_25 = arith.constant 0 : index
      %c0_26 = arith.constant 0 : index
      %33 = vector.load %arg4[%c0_25, %c0_26] : memref<1x1xf32, #tpu.memory_space<vmem>>, vector<1x1xf32>
      tpu.vector_store %arg4[%c0_25, %c0_26], %32 {strides = array<i32>} : memref<1x1xf32, #tpu.memory_space<vmem>>, vector<1x1xf32>,
    } else {
    }
    return
  }
  func.func @transform_0(%arg0: i32) -> (i32, i32) {
    %c0_i32 = arith.constant 0 : i32
    %c0_i32_0 = arith.constant 0 : i32
    return %arg0, %c0_i32 : i32, i32
  }
  func.func @transform_1(%arg0: i32) -> (i32, i32) {
    %c0_i32 = arith.constant 0 : i32
    %c0_i32_0 = arith.constant 0 : i32
    return %arg0, %c0_i32 : i32, i32
  }
  func.func @transform_2(%arg0: i32) -> (i32, i32) {
    %c0_i32 = arith.constant 0 : i32
    %c0_i32_0 = arith.constant 0 : i32
    return %arg0, %c0_i32 : i32, i32
  }
  func.func @transform_3(%arg0: i32) -> (i32, i32) {
    %c0_i32 = arith.constant 0 : i32
    %c0_i32_0 = arith.constant 0 : i32
    %c0_i32_1 = arith.constant 0 : i32
    return %c0_i32, %c0_i32_0 : i32, i32
  }
}

</mosaic_0001>

<llo_original>
// kernel: tpu_custom_call.1
$region0: #{tpu_custom_call.1}
  #allocation0 [shape = 'u32[]', space=smem, size = 0x4, offset = 0x4, fixed_abs, tag = 'smem constant byte address 0x4 - core index']
  #allocation1 [shape = 'u32[144,128]{1,0:T(1,128)}', space=vmem, size = 0x12000, scoped, tag = 'internal scratch']
  #allocation2 [shape = 'f32[8,128]{1,0:T(8,128)}', space=vmem, size = 0x1000, scoped, tag = 'scratch operand']
  #allocation3 [shape = 'f32[8,128]{1,0:T(8,128)}', space=vmem, size = 0x1000, scoped, tag = 'scratch operand']
  %s0 = inlined_call_operand.hbm [shape: f32[8,128], index: 0, kind: input, shape index: {}]
  %s1 = inlined_call_operand.hbm [shape: f32[8,128], index: 1, kind: input, shape index: {}]
  %s2 = inlined_call_operand.hbm [shape: f32[8,128], index: 2, kind: input, shape index: {}]
  %s3 = inlined_call_operand.hbm [shape: f32[1,1], index: 3, kind: output, shape index: {}]
  %s4 = sld [smem:[#allocation0]]
  $region42: #{tpu_custom_call.1} parent=0
    _
  %s6 = ssub.s32 1, %s4
  %s7 = scalar_select 0, %s6, %s4
  $region1: #{tpu_custom_call.1} parent=0
    #allocation4 [shape = 'u8[4096]{0}', space=vmem, size = 0x1000, scoped, tag = 'input window, operand 0, single buffered']
    #allocation5 [shape = 's32[1]{0}', space=sflag, size = 0x4, scoped, tag = 'scoped memory for tpu_custom_call.1']
    #allocation6 [shape = 's32[1]{0}', space=sflag, size = 0x4, scoped, tag = 'scoped memory for tpu_custom_call.1']
    #allocation7 [shape = 'u8[4096]{0}', space=vmem, size = 0x1000, scoped, tag = 'input window, operand 1, single buffered']
    #allocation8 [shape = 's32[1]{0}', space=sflag, size = 0x4, scoped, tag = 'scoped memory for tpu_custom_call.1']
    #allocation9 [shape = 'u8[4096]{0}', space=vmem, size = 0x1000, scoped, tag = 'input window, operand 2, single buffered']
    #allocation10 [shape = 'u8[512]{0}', space=vmem, size = 0x400, scoped, tag = 'output window, operand 0, single buffered']
    %8 = vsyncpa [#allocation5], 0
    %9 = vsyncpa [#allocation8], 0
    %10 = vsyncpa [#allocation6], 0
    // Predicated region
    $region2: #{tpu_custom_call.1} parent=1 // pred_check
      _
    $region3: #{tpu_custom_call.1} parent=1 // pred_check_branch
      %12 = sbr.rel (0) target = $region5
    $region4: #{tpu_custom_call.1} parent=1 // pred_region
      %s14 = ssub.s32 128, 128
      %15 = vsyncadd [#allocation5], %s14
      %s17 = sshll.u32 [#allocation4], 4
      %s18 = int_to_ptr.vmem [resolvable:$true] %s17
      %20 = dma.hbm_to_vmem [thread:$0]  %s0, 128, %s18, [#allocation5]
    $region5: #{tpu_custom_call.1} parent=1 // pred_fallthru
      _
    // Predicated region
    $region6: #{tpu_custom_call.1} parent=1 // pred_check
      _
    $region7: #{tpu_custom_call.1} parent=1 // pred_check_branch
      %22 = sbr.rel (0) target = $region9
    $region8: #{tpu_custom_call.1} parent=1 // pred_region
      %s24 = ssub.s32 128, 128
      %25 = vsyncadd [#allocation8], %s24
      %s27 = sshll.u32 [#allocation7], 4
      %s28 = int_to_ptr.vmem [resolvable:$true] %s27
      %30 = dma.hbm_to_vmem [thread:$0]  %s1, 128, %s28, [#allocation8]
    $region9: #{tpu_custom_call.1} parent=1 // pred_fallthru
      _
    // Predicated region
    $region10: #{tpu_custom_call.1} parent=1 // pred_check
      _
    $region11: #{tpu_custom_call.1} parent=1 // pred_check_branch
      %32 = sbr.rel (0) target = $region13
    $region12: #{tpu_custom_call.1} parent=1 // pred_region
      %s34 = ssub.s32 128, 128
      %35 = vsyncadd [#allocation8], %s34
      %s37 = sshll.u32 [#allocation9], 4
      %s38 = int_to_ptr.vmem [resolvable:$true] %s37
      %40 = dma.hbm_to_vmem [thread:$0]  %s2, 128, %s38, [#allocation8]
    $region13: #{tpu_custom_call.1} parent=1 // pred_fallthru
      _
    // Predicated region
    $region14: #{tpu_custom_call.1} parent=1 // pred_check
      _
    $region15: #{tpu_custom_call.1} parent=1 // pred_check_branch
      %42 = sbr.rel (0) target = $region17
    $region16: #{tpu_custom_call.1} parent=1 // pred_region
      %43 = dma.done [#allocation5], 128
    $region17: #{tpu_custom_call.1} parent=1 // pred_fallthru
      _
    // Predicated region
    $region18: #{tpu_custom_call.1} parent=1 // pred_check
      _
    $region19: #{tpu_custom_call.1} parent=1 // pred_check_branch
      %45 = sbr.rel (0) target = $region21
    $region20: #{tpu_custom_call.1} parent=1 // pred_region
      %46 = dma.done [#allocation8], 128
    $region21: #{tpu_custom_call.1} parent=1 // pred_fallthru
      _
    // Predicated region
    $region22: #{tpu_custom_call.1} parent=1 // pred_check
      _
    $region23: #{tpu_custom_call.1} parent=1 // pred_check_branch
      %48 = sbr.rel (0) target = $region25
    $region24: #{tpu_custom_call.1} parent=1 // pred_region
      %49 = dma.done [#allocation8], 128
    $region25: #{tpu_custom_call.1} parent=1 // pred_fallthru
      _
    %p50 = scmp.eq.s32.totalorder 0, 0
    // Predicated region
    $region26: #{tpu_custom_call.1} parent=1 // pred_check
      %p51 = pneg %p50
    $region27: #{tpu_custom_call.1} parent=1 // pred_check_branch
      %53 = sbr.rel (%p51) target = $region29
    $region28: #{tpu_custom_call.1} parent=1 // pred_region
      %54 = vst [vmem:[#allocation2] sm:$0xff] 0.0
      %55 = vst [vmem:[#allocation3] sm:$0xff] 0.0
    $region29: #{tpu_custom_call.1} parent=1 // pred_fallthru
      _
    %v56 = vld [vmem:[#allocation4] sm:$0xff]
    %v57 = vld [vmem:[#allocation7] sm:$0xff]
    %v58 = vsub.f32 %v56, %v57
    %v59 = vld [vmem:[#allocation9] sm:$0xff]
    %v60 = vld [vmem:[#allocation2] sm:$0xff]
    %v61 = vmul.f32 %v58, %v58
    %v62 = vmul.f32 %v61, %v59
    %v63 = vadd.f32 %v62, 0.0
    %v64 = vadd.f32 %v60, %v63
    %65 = vst [vmem:[#allocation2] sm:$0xff] %v64
    %v66 = vld [vmem:[#allocation3] sm:$0xff]
    %v67 = vadd.f32 %v59, 0.0
    %v68 = vadd.f32 %v66, %v67
    %69 = vst [vmem:[#allocation3] sm:$0xff] %v68
    // Predicated region
    $region30: #{tpu_custom_call.1} parent=1 // pred_check
      %p70 = pneg %p50
    $region31: #{tpu_custom_call.1} parent=1 // pred_check_branch
      %72 = sbr.rel (%p70) target = $region33
    $region32: #{tpu_custom_call.1} parent=1 // pred_region
      %v73 = vld [vmem:[#allocation2] sm:$0xff]
      %v74 = vrot.slane %v73, 4
      %v75 = vadd.f32 %v73, %v74
      %v76 = vrot.slane %v75, 2
      %v77 = vadd.f32 %v75, %v76
      %v78 = vrot.slane %v77, 1
      %v79 = vadd.f32 %v77, %v78
      %80 = vadd.xlane.f32.xlu0 %v79
      %v81 = vpop.xlane.xlu0 %80
      %v82 = vld [vmem:[#allocation3] sm:$0xff]
      %v83 = vrot.slane %v82, 4
      %v84 = vadd.f32 %v82, %v83
      %v85 = vrot.slane %v84, 2
      %v86 = vadd.f32 %v84, %v85
      %v87 = vrot.slane %v86, 1
      %v88 = vadd.f32 %v86, %v87
      %89 = vadd.xlane.f32.xlu0 %v88
      %v90 = vpop.xlane.xlu0 %89
      %v91 = vrcp.pop %v90
      %v92 = vmul.f32 %v81, %v91
      %vm93 = vcmask 0
      %94 = vst.msk [vmem:[#allocation10] sm:$0x1] %vm93, %v92
    $region33: #{tpu_custom_call.1} parent=1 // pred_fallthru
      _
    // Predicated region
    $region34: #{tpu_custom_call.1} parent=1 // pred_check
      _
    $region35: #{tpu_custom_call.1} parent=1 // pred_check_branch
      %96 = sbr.rel (0) target = $region37
    $region36: #{tpu_custom_call.1} parent=1 // pred_region
      %s98 = ssub.s32 16, 16
      %99 = vsyncadd [#allocation6], %s98
      %s101 = sshll.u32 [#allocation10], 4
      %s102 = int_to_ptr.vmem [resolvable:$true] %s101
      %104 = dma.vmem_to_hbm [thread:$0]  %s102, 16, %s3, [#allocation6]
    $region37: #{tpu_custom_call.1} parent=1 // pred_fallthru
      _
    // Predicated region
    $region38: #{tpu_custom_call.1} parent=1 // pred_check
      _
    $region39: #{tpu_custom_call.1} parent=1 // pred_check_branch
      %106 = sbr.rel (0) target = $region41
    $region40: #{tpu_custom_call.1} parent=1 // pred_region
      %107 = dma.done [#allocation6], 16
    $region41: #{tpu_custom_call.1} parent=1 // pred_fallthru
      _
    %108 = vsyncpa [#allocation5], 1
    %109 = vsyncpa [#allocation8], 1
    %110 = vsyncpa [#allocation6], 1

</llo_original>
